<compile_context>
chip_gen: v5e
topology: v5e:2x2
jax: 0.10.0
libtpu: 0.0.40
codegen_flags: <defaults>
</compile_context>

<pallas_src>
import jax
import jax.numpy as jnp
from jax.experimental import pallas as pl
from jax.experimental.pallas import tpu as pltpu


def _mixer_kernel(w1_ref, w2_ref, x1_ref, x2_ref, o_ref):
    # Scalars live in SMEM; the elementwise hot path runs on the VPU over the
    # full VMEM tile.
    w1 = w1_ref[0]
    w2 = w2_ref[0]
    # z = w1 * x1 + w2 + x2   (weight_2 is ADDED, per the reference module)
    z = w1 * x1_ref[...] + w2 + x2_ref[...]
    o_ref[...] = z.astype(o_ref.dtype)  # dtype-robust if inputs are bf16


def _pick_tiling(n, itemsize):
    """Choose (lane_width, pad, rows, tile_rows) for a flattened size-n array."""
    lane_w, pad = None, 0
    for lw in (4096, 2048, 1024, 512, 256, 128):
        if n % lw == 0:
            lane_w = lw
            break
    if lane_w is None:
        lane_w = 512
        pad = (-n) % lane_w
    rows = (n + pad) // lane_w

    # Target ~4 MiB per array per tile: 3 arrays x 2 pipeline buffers ~= 24 MiB.
    target_rows = max(8, (4 << 20) // (lane_w * itemsize))
    if rows <= target_rows:
        tile_rows = rows  # block equals full dim -> always a legal block shape
    else:
        # Multiple of 16 sublanes: satisfies the (8,128) rule for f32 and the
        # packed-sublane layout for bf16.
        tile_rows = max(16, (target_rows // 16) * 16)
    return lane_w, pad, rows, tile_rows


def weighted_sum_mixer(x1, x2, weight_1, weight_2):
    """Pallas TPU implementation of WeightedSumMixer.forward."""
    assert x1.shape == x2.shape and x1.dtype == x2.dtype
    orig_shape = x1.shape
    out_dtype = x1.dtype

    # Parameters are nn.Parameter(torch.randn(1)) -> keep them as (1,) scalars.
    w1 = jnp.asarray(weight_1).reshape((1,))
    w2 = jnp.asarray(weight_2).reshape((1,))

    # Elementwise op -> any reshape is legal. Flatten to a lane-dense 2-D slab.
    n = x1.size
    itemsize = jnp.dtype(x1.dtype).itemsize
    lane_w, pad, rows, tile_rows = _pick_tiling(n, itemsize)

    x1f = x1.reshape(-1)
    x2f = x2.reshape(-1)
    if pad:
        x1f = jnp.pad(x1f, (0, pad))
        x2f = jnp.pad(x2f, (0, pad))
    x1f = x1f.reshape(rows, lane_w)
    x2f = x2f.reshape(rows, lane_w)

    grid = (pl.cdiv(rows, tile_rows),)
    data_block = pl.BlockSpec((tile_rows, lane_w), lambda i: (i, 0))

    # VMEM budget: 3 arrays x 2 pipeline buffers x tile bytes, plus slack.
    tile_bytes = tile_rows * lane_w * itemsize
    vmem_bytes = min(max(3 * 2 * tile_bytes + (1 << 20), 16 << 20), 56 << 20)

    out = pl.pallas_call(
        _mixer_kernel,
        out_shape=jax.ShapeDtypeStruct((rows, lane_w), out_dtype),
        grid=grid,
        in_specs=[
            pl.BlockSpec(memory_space=pltpu.SMEM),  # weight_1 (1,)
            pl.BlockSpec(memory_space=pltpu.SMEM),  # weight_2 (1,)
            data_block,                             # x1 tile
            data_block,                             # x2 tile
        ],
        out_specs=data_block,
        compiler_params=pltpu.CompilerParams(
            # Row tiles are independent -> shard across TCs on v7x megacore.
            dimension_semantics=("parallel",),
            vmem_limit_bytes=vmem_bytes,
        ),
    )(w1, w2, x1f, x2f)

    out = out.reshape(-1)
    if pad:
        out = out[:n]
    return out.reshape(orig_shape)


if __name__ == "__main__":
    key = jax.random.PRNGKey(0)
    k_w1, k_w2, k_x1, k_x2 = jax.random.split(key, 4)

    # Parameters: nn.Parameter(torch.randn(1)) -> shape (1,) float32, init
    # deterministically from the JAX PRNG (synthetic, no checkpoint load).
    weight_1 = jax.random.normal(k_w1, (1,), dtype=jnp.float32)
    weight_2 = jax.random.normal(k_w2, (1,), dtype=jnp.float32)

    # Small shapes consistent with the module: batch=2, seq=8, hidden=32.
    batch, seq, hidden = 2, 8, 32
    x1 = jax.random.normal(k_x1, (batch, seq, hidden), dtype=jnp.float32)
    x2 = jax.random.normal(k_x2, (batch, seq, hidden), dtype=jnp.float32)

    z = weighted_sum_mixer(x1, x2, weight_1, weight_2)
    z = jax.block_until_ready(z)

    # Pure-JAX reference check of the exact semantics.
    z_ref = weight_1[0] * x1 + weight_2[0] + x2
    assert z.shape == x1.shape and z.dtype == x1.dtype
    assert jnp.allclose(z, z_ref, atol=1e-6, rtol=1e-6)

    print("KERNEL_OK")
</pallas_src>

<mosaic_0001>
module attributes {stable_mosaic.version = 11 : i64} {
  func.func @_mixer_kernel(%arg0: i32, %arg1: memref<1xf32, #tpu.memory_space<smem>>, %arg2: memref<1xf32, #tpu.memory_space<smem>>, %arg3: memref<1x512xf32, #tpu.memory_space<vmem>>, %arg4: memref<1x512xf32, #tpu.memory_space<vmem>>, %arg5: memref<1x512xf32, #tpu.memory_space<vmem>>) attributes {dimension_semantics = [#tpu.dimension_semantics<parallel>], iteration_bounds = array<i64: 1>, scalar_prefetch = 0 : i64, scratch_operands = 0 : i64, tpu.core_type = #tpu.core_type<tc>, window_params = [{transform_indices = @transform_0, window_bounds = array<i64: 1>}, {transform_indices = @transform_1, window_bounds = array<i64: 1>}, {transform_indices = @transform_2, window_bounds = array<i64: 1, 512>}, {transform_indices = @transform_3, window_bounds = array<i64: 1, 512>}, {transform_indices = @transform_4, window_bounds = array<i64: 1, 512>}]} {
    %c0 = arith.constant 0 : index
    %0 = memref.load %arg1[%c0] : memref<1xf32, #tpu.memory_space<smem>>
    %c0_0 = arith.constant 0 : index
    %1 = memref.load %arg2[%c0_0] : memref<1xf32, #tpu.memory_space<smem>>
    %c0_1 = arith.constant 0 : index
    %c0_2 = arith.constant 0 : index
    %2 = vector.load %arg3[%c0_1, %c0_2] : memref<1x512xf32, #tpu.memory_space<vmem>>, vector<1x512xf32>
    %3 = vector.broadcast %0 : f32 to vector<1x512xf32>
    %4 = arith.mulf %3, %2 : vector<1x512xf32>
    %5 = vector.broadcast %1 : f32 to vector<1x512xf32>
    %6 = arith.addf %4, %5 : vector<1x512xf32>
    %c0_3 = arith.constant 0 : index
    %c0_4 = arith.constant 0 : index
    %7 = vector.load %arg4[%c0_3, %c0_4] : memref<1x512xf32, #tpu.memory_space<vmem>>, vector<1x512xf32>
    %8 = arith.addf %6, %7 : vector<1x512xf32>
    %c0_5 = arith.constant 0 : index
    %c0_6 = arith.constant 0 : index
    %9 = vector.load %arg5[%c0_5, %c0_6] : memref<1x512xf32, #tpu.memory_space<vmem>>, vector<1x512xf32>
    tpu.vector_store %arg5[%c0_5, %c0_6], %8 {strides = array<i32>} : memref<1x512xf32, #tpu.memory_space<vmem>>, vector<1x512xf32>,
    return
  }
  func.func @transform_0(%arg0: i32) -> i32 {
    %c0_i32 = arith.constant 0 : i32
    %c0_i32_0 = arith.constant 0 : i32
    return %c0_i32 : i32
  }
  func.func @transform_1(%arg0: i32) -> i32 {
    %c0_i32 = arith.constant 0 : i32
    %c0_i32_0 = arith.constant 0 : i32
    return %c0_i32 : i32
  }
  func.func @transform_2(%arg0: i32) -> (i32, i32) {
    %c0_i32 = arith.constant 0 : i32
    %c0_i32_0 = arith.constant 0 : i32
    return %arg0, %c0_i32 : i32, i32
  }
  func.func @transform_3(%arg0: i32) -> (i32, i32) {
    %c0_i32 = arith.constant 0 : i32
    %c0_i32_0 = arith.constant 0 : i32
    return %arg0, %c0_i32 : i32, i32
  }
  func.func @transform_4(%arg0: i32) -> (i32, i32) {
    %c0_i32 = arith.constant 0 : i32
    %c0_i32_0 = arith.constant 0 : i32
    return %arg0, %c0_i32 : i32, i32
  }
}

</mosaic_0001>

<llo_original>
// kernel: tpu_custom_call.1
$region0: #{tpu_custom_call.1}
  #allocation0 [shape = 'u32[]', space=smem, size = 0x4, offset = 0x4, fixed_abs, tag = 'smem constant byte address 0x4 - core index']
  #allocation1 [shape = 'u32[72,128]{1,0:T(1,128)}', space=vmem, size = 0x9000, scoped, tag = 'internal scratch']
  #allocation2 [shape = 'f32[1]{0:T(128)S(6)}', space=smem, size = 0x200, scoped, tag = 'scoped memory for tpu_custom_call.1']
  #allocation3 [shape = 'f32[1]{0:T(128)S(6)}', space=smem, size = 0x200, scoped, tag = 'scoped memory for tpu_custom_call.1']
  %s0 = inlined_call_operand.<no memory space> [shape: f32[1], index: 0, kind: input, shape index: {}]
  %s1 = inlined_call_operand.<no memory space> [shape: f32[1], index: 1, kind: input, shape index: {}]
  %s2 = inlined_call_operand.vmem [shape: f32[1,512], index: 2, kind: input, shape index: {}]
  %s3 = inlined_call_operand.hbm [shape: f32[1,512], index: 3, kind: input, shape index: {}]
  %s4 = inlined_call_operand.hbm [shape: f32[1,512], index: 4, kind: output, shape index: {}]
  %s5 = sld [smem:[#allocation0]]
  $region30: #{tpu_custom_call.1} parent=0
    _
  %s7 = ssub.s32 1, %s5
  %s8 = scalar_select 0, %s7, %s5
  %9 = sst [smem:[#allocation2]] %s0
  %10 = sst [smem:[#allocation3]] %s1
  $region1: #{tpu_custom_call.1} parent=0
    #allocation4 [shape = 'u8[2048]{0}', space=vmem, size = 0x800, scoped, tag = 'input window, operand 3, single buffered']
    #allocation5 [shape = 's32[1]{0}', space=sflag, size = 0x4, scoped, tag = 'scoped memory for tpu_custom_call.1']
    #allocation6 [shape = 's32[1]{0}', space=sflag, size = 0x4, scoped, tag = 'scoped memory for tpu_custom_call.1']
    #allocation7 [shape = 'u8[2048]{0}', space=vmem, size = 0x800, scoped, tag = 'output window, operand 0, single buffered']
    %11 = vsyncpa [#allocation5], 0
    %12 = vsyncpa [#allocation6], 0
    // Predicated region
    $region2: #{tpu_custom_call.1} parent=1 // pred_check
      _
    $region3: #{tpu_custom_call.1} parent=1 // pred_check_branch
      %14 = sbr.rel (0) target = $region5
    $region4: #{tpu_custom_call.1} parent=1 // pred_region
      _
    $region5: #{tpu_custom_call.1} parent=1 // pred_fallthru
      _
    // Predicated region
    $region6: #{tpu_custom_call.1} parent=1 // pred_check
      _
    $region7: #{tpu_custom_call.1} parent=1 // pred_check_branch
      %16 = sbr.rel (0) target = $region9
    $region8: #{tpu_custom_call.1} parent=1 // pred_region
      _
    $region9: #{tpu_custom_call.1} parent=1 // pred_fallthru
      _
    // Predicated region
    $region10: #{tpu_custom_call.1} parent=1 // pred_check
      _
    $region11: #{tpu_custom_call.1} parent=1 // pred_check_branch
      %18 = sbr.rel (0) target = $region13
    $region12: #{tpu_custom_call.1} parent=1 // pred_region
      _
    $region13: #{tpu_custom_call.1} parent=1 // pred_fallthru
      _
    // Predicated region
    $region14: #{tpu_custom_call.1} parent=1 // pred_check
      _
    $region15: #{tpu_custom_call.1} parent=1 // pred_check_branch
      %20 = sbr.rel (0) target = $region17
    $region16: #{tpu_custom_call.1} parent=1 // pred_region
      %22 = vsyncadd [#allocation5], 0
      %s24 = sshll.u32 %s3, 4
      %s25 = int_to_ptr.hbm [resolvable:$true] %s24
      %s26 = sshll.u32 [#allocation4], 4
      %s27 = int_to_ptr.vmem [resolvable:$true] %s26
      %29 = dma.hbm_to_vmem [thread:$0]  %s25, 64, %s27, [#allocation5]
    $region17: #{tpu_custom_call.1} parent=1 // pred_fallthru
      _
    // Predicated region
    $region18: #{tpu_custom_call.1} parent=1 // pred_check
      _
    $region19: #{tpu_custom_call.1} parent=1 // pred_check_branch
      %31 = sbr.rel (0) target = $region21
    $region20: #{tpu_custom_call.1} parent=1 // pred_region
      %33 = dma.done [#allocation5], 64
    $region21: #{tpu_custom_call.1} parent=1 // pred_fallthru
      _
    %s34 = sld [smem:[#allocation2]]
    %s35 = sld [smem:[#allocation3]]
    %v36 = vld [vmem:[%s2] sm:$0xf]
    %v37 = vstv %s34
    %v38 = vmul.f32 %v37, %v36
    %v39 = vstv %s35
    %v40 = vadd.f32 %v38, %v39
    %v41 = vld [vmem:[#allocation4] sm:$0xf]
    %v42 = vadd.f32 %v40, %v41
    %v43 = vlaneseq
    %vm44 = vcmp.ge.s32.totalorder %v43, 0
    %vm45 = vcmp.lt.s32.totalorder %v43, 512
    %vm46 = vmand %vm44, %vm45
    %47 = vst.msk [vmem:[#allocation7] sm:$0xf] %vm46, %v42
    // Predicated region
    $region22: #{tpu_custom_call.1} parent=1 // pred_check
      _
    $region23: #{tpu_custom_call.1} parent=1 // pred_check_branch
      %49 = sbr.rel (0) target = $region25
    $region24: #{tpu_custom_call.1} parent=1 // pred_region
      %51 = vsyncadd [#allocation6], 0
      %s53 = sshll.u32 [#allocation7], 4
      %s54 = int_to_ptr.vmem [resolvable:$true] %s53
      %s55 = sshll.u32 %s4, 4
      %s56 = int_to_ptr.hbm [resolvable:$true] %s55
      %58 = dma.vmem_to_hbm [thread:$0]  %s54, 64, %s56, [#allocation6]
    $region25: #{tpu_custom_call.1} parent=1 // pred_fallthru
      _
    // Predicated region
    $region26: #{tpu_custom_call.1} parent=1 // pred_check
      _
    $region27: #{tpu_custom_call.1} parent=1 // pred_check_branch
      %60 = sbr.rel (0) target = $region29
    $region28: #{tpu_custom_call.1} parent=1 // pred_region
      %62 = dma.done [#allocation6], 64
    $region29: #{tpu_custom_call.1} parent=1 // pred_fallthru
      _
    %63 = vsyncpa [#allocation5], 1
    %64 = vsyncpa [#allocation6], 1

</llo_original>
